<compile_context>
chip_gen: v5e
topology: v5e:2x2
jax: 0.10.0
libtpu: 0.0.40
codegen_flags: <defaults>
</compile_context>

<pallas_src>
import jax
import jax.numpy as jnp
from jax import lax
from jax.experimental import pallas as pl
from jax.experimental.pallas import tpu as pltpu


def _pseudo_nms_kernel(x_ref, o_ref):
    x = x_ref[...]                      # (Ct, H, W)
    _, H, W = x.shape
    zero = jnp.zeros((), x.dtype)

    # Per-axis boundary masks (broadcast over channels / the other axis).
    col = lax.broadcasted_iota(jnp.int32, (1, 1, W), 2)
    row = lax.broadcasted_iota(jnp.int32, (1, H, 1), 1)

    # Pass 1: 1x3 max along W with zero padding.
    #   roll(shift=1)[..., j]     == x[..., j-1]  (wrap masked to 0)
    #   roll(shift=W-1)[..., j]   == x[..., j+1]  (wrap masked to 0)
    left = jnp.where(col >= 1, pltpu.roll(x, shift=1, axis=2), zero)
    right = jnp.where(col < W - 1, pltpu.roll(x, shift=W - 1, axis=2), zero)
    m = jnp.maximum(x, jnp.maximum(left, right))

    # Pass 2: 3x1 max along H with zero padding, on the row-max result.
    up = jnp.where(row >= 1, pltpu.roll(m, shift=1, axis=1), zero)
    down = jnp.where(row < H - 1, pltpu.roll(m, shift=H - 1, axis=1), zero)
    x_max = jnp.maximum(m, jnp.maximum(up, down))

    # Keep only local maxima. Multiply (not select) to exactly match
    # `x * (x == x_max).float()`, including NaN propagation.
    o_ref[...] = x * (x == x_max).astype(x.dtype)


def _vmem_capacity_bytes():
    """Physical VMEM of the current chip; conservative 64 MiB fallback (v7x)."""
    try:
        return int(pltpu.get_tpu_info().vmem_capacity_bytes)
    except Exception:
        return 64 << 20


def _pick_tile(n_slabs, slab_bytes, block_budget):
    """Largest tile that (a) divides n_slabs and (b) keeps one block <= budget."""
    max_t = max(1, block_budget // max(1, slab_bytes))
    t = min(n_slabs, max_t)
    while n_slabs % t != 0:
        t -= 1
    return t


def pseudo_nms(x, *, c_tile=None):
    B, C, H, W = x.shape
    itemsize = jnp.dtype(x.dtype).itemsize
    n = B * C
    slab_bytes = H * W * itemsize

    # Budget one block so that (1 input + 1 output) x 2 double buffers stay
    # well under physical VMEM on every generation (64 MiB on v7x).
    vmem_cap = _vmem_capacity_bytes()
    block_budget = min(8 << 20, (vmem_cap // 2) // 4)

    if c_tile is None:
        c_tile = _pick_tile(n, slab_bytes, block_budget)
    assert n % c_tile == 0, "c_tile must divide B*C"

    block_bytes = c_tile * slab_bytes
    # Explicit scoped-VMEM limit: 4 resident blocks + compiler scratch slack,
    # clamped to ~90% of physical (v5e's scoped default is only 16 MiB).
    vmem_limit = int(min(vmem_cap * 0.9,
                         max(32 << 20, 4 * block_bytes + (4 << 20))))
    # TODO(synk): if a single (H, W) channel slab alone exceeds the budget
    # (huge feature maps on v7x), tile H with a 1-row halo instead of ct=1.

    x_flat = x.reshape(n, H, W)

    out = pl.pallas_call(
        _pseudo_nms_kernel,
        out_shape=jax.ShapeDtypeStruct((n, H, W), x.dtype),
        grid_spec=pltpu.PrefetchScalarGridSpec(
            num_scalar_prefetch=0,
            grid=(n // c_tile,),
            in_specs=[pl.BlockSpec((c_tile, H, W), lambda i: (i, 0, 0))],
            out_specs=pl.BlockSpec((c_tile, H, W), lambda i: (i, 0, 0)),
        ),
        compiler_params=pltpu.CompilerParams(
            dimension_semantics=("parallel",),
            vmem_limit_bytes=vmem_limit),
        cost_estimate=pl.CostEstimate(
            flops=10 * n * H * W,          # ~4 max + 4 select + cmp + mul / elem
            transcendentals=0,
            bytes_accessed=2 * n * H * W * itemsize),
    )(x_flat)
    return out.reshape(B, C, H, W)


def _pseudo_nms_reference(x):
    # Pure-JAX reference: zero-pad, 3x3 max pool (stride 1), keep local maxima.
    xp = jnp.pad(x, ((0, 0), (0, 0), (1, 1), (1, 1)),
                 mode="constant", constant_values=0.0)
    x_max = lax.reduce_window(xp, -jnp.inf, lax.max,
                              window_dimensions=(1, 1, 3, 3),
                              window_strides=(1, 1, 1, 1),
                              padding="VALID")
    return x * (x == x_max).astype(x.dtype)


if __name__ == "__main__":
    key = jax.random.PRNGKey(0)
    B, C, H, W = 2, 4, 16, 16
    x = jax.random.normal(key, (B, C, H, W), dtype=jnp.float32)

    ref = _pseudo_nms_reference(x)

    out = jax.block_until_ready(pseudo_nms(x))
    assert out.shape == (B, C, H, W)
    assert out.dtype == jnp.float32
    assert jnp.array_equal(out, ref), "mismatch vs reference"

    # Exercise the tiled (multi-step) grid path explicitly.
    out2 = jax.block_until_ready(pseudo_nms(x, c_tile=2))
    assert jnp.array_equal(out2, ref), "mismatch vs reference (c_tile=2)"

    print("KERNEL_OK")
</pallas_src>

<mosaic_0001>
module attributes {stable_mosaic.version = 11 : i64} {
  func.func @_pseudo_nms_kernel(%arg0: i32, %arg1: memref<8x16x16xf32, #tpu.memory_space<vmem>>, %arg2: memref<8x16x16xf32, #tpu.memory_space<vmem>>) attributes {dimension_semantics = [#tpu.dimension_semantics<parallel>], iteration_bounds = array<i64: 1>, scalar_prefetch = 0 : i64, scratch_operands = 0 : i64, tpu.core_type = #tpu.core_type<tc>, window_params = [{transform_indices = @transform_0, window_bounds = array<i64: 8, 16, 16>}, {transform_indices = @transform_1, window_bounds = array<i64: 8, 16, 16>}]} {
    %c0 = arith.constant 0 : index
    %c0_0 = arith.constant 0 : index
    %c0_1 = arith.constant 0 : index
    %0 = vector.load %arg1[%c0, %c0_0, %c0_1] : memref<8x16x16xf32, #tpu.memory_space<vmem>>, vector<8x16x16xf32>
    %1 = tpu.iota {dimensions = array<i32: 2>} : vector<1x1x16xi32>
    %2 = tpu.iota {dimensions = array<i32: 1>} : vector<1x16x1xi32>
    %c1_i32 = arith.constant 1 : i32
    %3 = vector.broadcast %c1_i32 : i32 to vector<1x1x16xi32>
    %4 = arith.cmpi sge, %1, %3 : vector<1x1x16xi32>
    %c1_i32_2 = arith.constant 1 : i32
    %5 = tpu.dynamic_rotate %0 by %c1_i32_2 dim 2 : vector<8x16x16xf32>, i32 -> vector<8x16x16xf32>
    %cst = arith.constant 0.000000e+00 : f32
    %6 = vector.shape_cast %4 : vector<1x1x16xi1> to vector<1x1x16xi1>
    %7 = vector.broadcast %6 : vector<1x1x16xi1> to vector<8x16x16xi1>
    %8 = vector.broadcast %cst : f32 to vector<8x16x16xf32>
    %9 = arith.select %7, %5, %8 : vector<8x16x16xi1>, vector<8x16x16xf32>
    %c15_i32 = arith.constant 15 : i32
    %10 = vector.broadcast %c15_i32 : i32 to vector<1x1x16xi32>
    %11 = arith.cmpi slt, %1, %10 : vector<1x1x16xi32>
    %c15_i32_3 = arith.constant 15 : i32
    %12 = tpu.dynamic_rotate %0 by %c15_i32_3 dim 2 : vector<8x16x16xf32>, i32 -> vector<8x16x16xf32>
    %cst_4 = arith.constant 0.000000e+00 : f32
    %13 = vector.shape_cast %11 : vector<1x1x16xi1> to vector<1x1x16xi1>
    %14 = vector.broadcast %13 : vector<1x1x16xi1> to vector<8x16x16xi1>
    %15 = vector.broadcast %cst_4 : f32 to vector<8x16x16xf32>
    %16 = arith.select %14, %12, %15 : vector<8x16x16xi1>, vector<8x16x16xf32>
    %17 = arith.maximumf %9, %16 : vector<8x16x16xf32>
    %18 = arith.maximumf %0, %17 : vector<8x16x16xf32>
    %c1_i32_5 = arith.constant 1 : i32
    %19 = vector.broadcast %c1_i32_5 : i32 to vector<1x16x1xi32>
    %20 = arith.cmpi sge, %2, %19 : vector<1x16x1xi32>
    %c1_i32_6 = arith.constant 1 : i32
    %21 = tpu.dynamic_rotate %18 by %c1_i32_6 dim 1 : vector<8x16x16xf32>, i32 -> vector<8x16x16xf32>
    %cst_7 = arith.constant 0.000000e+00 : f32
    %22 = vector.shape_cast %20 : vector<1x16x1xi1> to vector<1x16x1xi1>
    %23 = vector.broadcast %22 : vector<1x16x1xi1> to vector<8x16x16xi1>
    %24 = vector.broadcast %cst_7 : f32 to vector<8x16x16xf32>
    %25 = arith.select %23, %21, %24 : vector<8x16x16xi1>, vector<8x16x16xf32>
    %c15_i32_8 = arith.constant 15 : i32
    %26 = vector.broadcast %c15_i32_8 : i32 to vector<1x16x1xi32>
    %27 = arith.cmpi slt, %2, %26 : vector<1x16x1xi32>
    %c15_i32_9 = arith.constant 15 : i32
    %28 = tpu.dynamic_rotate %18 by %c15_i32_9 dim 1 : vector<8x16x16xf32>, i32 -> vector<8x16x16xf32>
    %cst_10 = arith.constant 0.000000e+00 : f32
    %29 = vector.shape_cast %27 : vector<1x16x1xi1> to vector<1x16x1xi1>
    %30 = vector.broadcast %29 : vector<1x16x1xi1> to vector<8x16x16xi1>
    %31 = vector.broadcast %cst_10 : f32 to vector<8x16x16xf32>
    %32 = arith.select %30, %28, %31 : vector<8x16x16xi1>, vector<8x16x16xf32>
    %33 = arith.maximumf %25, %32 : vector<8x16x16xf32>
    %34 = arith.maximumf %18, %33 : vector<8x16x16xf32>
    %35 = arith.cmpf oeq, %0, %34 : vector<8x16x16xf32>
    %36 = arith.extui %35 : vector<8x16x16xi1> to vector<8x16x16xi32>
    %37 = arith.sitofp %36 : vector<8x16x16xi32> to vector<8x16x16xf32>
    %38 = arith.mulf %0, %37 : vector<8x16x16xf32>
    %c0_11 = arith.constant 0 : index
    %c0_12 = arith.constant 0 : index
    %c0_13 = arith.constant 0 : index
    %39 = vector.load %arg2[%c0_11, %c0_12, %c0_13] : memref<8x16x16xf32, #tpu.memory_space<vmem>>, vector<8x16x16xf32>
    tpu.vector_store %arg2[%c0_11, %c0_12, %c0_13], %38 {strides = array<i32>} : memref<8x16x16xf32, #tpu.memory_space<vmem>>, vector<8x16x16xf32>,
    return
  }
  func.func @transform_0(%arg0: i32) -> (i32, i32, i32) {
    %c0_i32 = arith.constant 0 : i32
    %c0_i32_0 = arith.constant 0 : i32
    %c0_i32_1 = arith.constant 0 : i32
    return %arg0, %c0_i32, %c0_i32_0 : i32, i32, i32
  }
  func.func @transform_1(%arg0: i32) -> (i32, i32, i32) {
    %c0_i32 = arith.constant 0 : i32
    %c0_i32_0 = arith.constant 0 : i32
    %c0_i32_1 = arith.constant 0 : i32
    return %arg0, %c0_i32, %c0_i32_0 : i32, i32, i32
  }
}

</mosaic_0001>

<llo_original>
// kernel: tpu_custom_call.1
$region0: #{tpu_custom_call.1}
  #allocation0 [shape = 'u32[]', space=smem, size = 0x4, offset = 0x4, fixed_abs, tag = 'smem constant byte address 0x4 - core index']
  #allocation1 [shape = 'u32[72,128]{1,0:T(1,128)}', space=vmem, size = 0x9000, scoped, tag = 'internal scratch']
  %s0 = inlined_call_operand.hbm [shape: f32[8,16,16], index: 0, kind: input, shape index: {}]
  %s1 = inlined_call_operand.hbm [shape: f32[8,16,16], index: 1, kind: output, shape index: {}]
  %s2 = sld [smem:[#allocation0]]
  $region18: #{tpu_custom_call.1} parent=0
    _
  %s4 = ssub.s32 1, %s2
  %s5 = scalar_select 0, %s4, %s2
  $region1: #{tpu_custom_call.1} parent=0
    #allocation2 [shape = 'u8[65536]{0}', space=vmem, size = 0x10000, scoped, tag = 'input window, operand 0, single buffered']
    #allocation3 [shape = 's32[1]{0}', space=sflag, size = 0x4, scoped, tag = 'scoped memory for tpu_custom_call.1']
    #allocation4 [shape = 's32[1]{0}', space=sflag, size = 0x4, scoped, tag = 'scoped memory for tpu_custom_call.1']
    #allocation5 [shape = 'u8[65536]{0}', space=vmem, size = 0x10000, scoped, tag = 'output window, operand 0, single buffered']
    %6 = vsyncpa [#allocation3], 0
    %7 = vsyncpa [#allocation4], 0
    // Predicated region
    $region2: #{tpu_custom_call.1} parent=1 // pred_check
      _
    $region3: #{tpu_custom_call.1} parent=1 // pred_check_branch
      %9 = sbr.rel (0) target = $region5
    $region4: #{tpu_custom_call.1} parent=1 // pred_region
      %11 = vsyncadd [#allocation3], 0
      %s12 = sshll.u32 %s0, 4
      %s13 = int_to_ptr.hbm [resolvable:$true] %s12
      %s14 = sshll.u32 [#allocation2], 4
      %s15 = int_to_ptr.vmem [resolvable:$true] %s14
      %20 = dma.hbm_to_vmem [thread:$0]  %s13, 2048, %s15, [#allocation3], 128, 128, 8
    $region5: #{tpu_custom_call.1} parent=1 // pred_fallthru
      _
    // Predicated region
    $region6: #{tpu_custom_call.1} parent=1 // pred_check
      _
    $region7: #{tpu_custom_call.1} parent=1 // pred_check_branch
      %22 = sbr.rel (0) target = $region9
    $region8: #{tpu_custom_call.1} parent=1 // pred_region
      %24 = dma.done [#allocation3], 2048
    $region9: #{tpu_custom_call.1} parent=1 // pred_fallthru
      _
    %v25 = vld [vmem:[#allocation2] sm:$0xff]
    %v26 = vld [vmem:[#allocation2 + $0x8] sm:$0xff]
    %v27 = vld [vmem:[#allocation2 + $0x10] sm:$0xff]
    %v28 = vld [vmem:[#allocation2 + $0x18] sm:$0xff]
    %v29 = vld [vmem:[#allocation2 + $0x20] sm:$0xff]
    %v30 = vld [vmem:[#allocation2 + $0x28] sm:$0xff]
    %v31 = vld [vmem:[#allocation2 + $0x30] sm:$0xff]
    %v32 = vld [vmem:[#allocation2 + $0x38] sm:$0xff]
    %v33 = vld [vmem:[#allocation2 + $0x40] sm:$0xff]
    %v34 = vld [vmem:[#allocation2 + $0x48] sm:$0xff]
    %v35 = vld [vmem:[#allocation2 + $0x50] sm:$0xff]
    %v36 = vld [vmem:[#allocation2 + $0x58] sm:$0xff]
    %v37 = vld [vmem:[#allocation2 + $0x60] sm:$0xff]
    %v38 = vld [vmem:[#allocation2 + $0x68] sm:$0xff]
    %v39 = vld [vmem:[#allocation2 + $0x70] sm:$0xff]
    %v40 = vld [vmem:[#allocation2 + $0x78] sm:$0xff]
    %v41 = vlaneseq
    %v42 = vand.u32 %v41, 127
    %v43 = vlaneseq
    %v44 = vshrl.u32 %v43, 7
    %v45 = vadd.s32 %v44, 8
    %vm46 = vcmp.ge.s32.totalorder %v42, 1
    %vm47 = vcmask 1047680
    %48 = vrot.lane.b32.xlu0 %v25, 16
    %v49 = vpop.permute.xlu0 %48
    %v50 = vsel %vm47, %v49, %v25
    %51 = vrot.lane.b32.xlu0 %v26, 16
    %v52 = vpop.permute.xlu0 %51
    %v53 = vsel %vm47, %v52, %v26
    %54 = vrot.lane.b32.xlu0 %v27, 16
    %v55 = vpop.permute.xlu0 %54
    %v56 = vsel %vm47, %v55, %v27
    %57 = vrot.lane.b32.xlu0 %v28, 16
    %v58 = vpop.permute.xlu0 %57
    %v59 = vsel %vm47, %v58, %v28
    %60 = vrot.lane.b32.xlu0 %v29, 16
    %v61 = vpop.permute.xlu0 %60
    %v62 = vsel %vm47, %v61, %v29
    %63 = vrot.lane.b32.xlu0 %v30, 16
    %v64 = vpop.permute.xlu0 %63
    %v65 = vsel %vm47, %v64, %v30
    %66 = vrot.lane.b32.xlu0 %v31, 16
    %v67 = vpop.permute.xlu0 %66
    %v68 = vsel %vm47, %v67, %v31
    %69 = vrot.lane.b32.xlu0 %v32, 16
    %v70 = vpop.permute.xlu0 %69
    %v71 = vsel %vm47, %v70, %v32
    %72 = vrot.lane.b32.xlu0 %v33, 16
    %v73 = vpop.permute.xlu0 %72
    %v74 = vsel %vm47, %v73, %v33
    %75 = vrot.lane.b32.xlu0 %v34, 16
    %v76 = vpop.permute.xlu0 %75
    %v77 = vsel %vm47, %v76, %v34
    %78 = vrot.lane.b32.xlu0 %v35, 16
    %v79 = vpop.permute.xlu0 %78
    %v80 = vsel %vm47, %v79, %v35
    %81 = vrot.lane.b32.xlu0 %v36, 16
    %v82 = vpop.permute.xlu0 %81
    %v83 = vsel %vm47, %v82, %v36
    %84 = vrot.lane.b32.xlu0 %v37, 16
    %v85 = vpop.permute.xlu0 %84
    %v86 = vsel %vm47, %v85, %v37
    %87 = vrot.lane.b32.xlu0 %v38, 16
    %v88 = vpop.permute.xlu0 %87
    %v89 = vsel %vm47, %v88, %v38
    %90 = vrot.lane.b32.xlu0 %v39, 16
    %v91 = vpop.permute.xlu0 %90
    %v92 = vsel %vm47, %v91, %v39
    %93 = vrot.lane.b32.xlu0 %v40, 16
    %v94 = vpop.permute.xlu0 %93
    %v95 = vsel %vm47, %v94, %v40
    %96 = vrot.lane.b32.xlu0 %v50, 16
    %v97 = vpop.permute.xlu0 %96
    %98 = vrot.lane.b32.xlu0 %v53, 16
    %v99 = vpop.permute.xlu0 %98
    %100 = vrot.lane.b32.xlu0 %v56, 16
    %v101 = vpop.permute.xlu0 %100
    %102 = vrot.lane.b32.xlu0 %v59, 16
    %v103 = vpop.permute.xlu0 %102
    %104 = vrot.lane.b32.xlu0 %v62, 16
    %v105 = vpop.permute.xlu0 %104
    %106 = vrot.lane.b32.xlu0 %v65, 16
    %v107 = vpop.permute.xlu0 %106
    %108 = vrot.lane.b32.xlu0 %v68, 16
    %v109 = vpop.permute.xlu0 %108
    %110 = vrot.lane.b32.xlu0 %v71, 16
    %v111 = vpop.permute.xlu0 %110
    %112 = vrot.lane.b32.xlu0 %v74, 16
    %v113 = vpop.permute.xlu0 %112
    %114 = vrot.lane.b32.xlu0 %v77, 16
    %v115 = vpop.permute.xlu0 %114
    %116 = vrot.lane.b32.xlu0 %v80, 16
    %v117 = vpop.permute.xlu0 %116
    %118 = vrot.lane.b32.xlu0 %v83, 16
    %v119 = vpop.permute.xlu0 %118
    %120 = vrot.lane.b32.xlu0 %v86, 16
    %v121 = vpop.permute.xlu0 %120
    %122 = vrot.lane.b32.xlu0 %v89, 16
    %v123 = vpop.permute.xlu0 %122
    %124 = vrot.lane.b32.xlu0 %v92, 16
    %v125 = vpop.permute.xlu0 %124
    %126 = vrot.lane.b32.xlu0 %v95, 16
    %v127 = vpop.permute.xlu0 %126
    %v128 = vsel %vm47, %v97, %v25
    %v129 = vsel %vm47, %v99, %v26
    %v130 = vsel %vm47, %v101, %v27
    %v131 = vsel %vm47, %v103, %v28
    %v132 = vsel %vm47, %v105, %v29
    %v133 = vsel %vm47, %v107, %v30
    %v134 = vsel %vm47, %v109, %v31
    %v135 = vsel %vm47, %v111, %v32
    %v136 = vsel %vm47, %v113, %v33
    %v137 = vsel %vm47, %v115, %v34
    %v138 = vsel %vm47, %v117, %v35
    %v139 = vsel %vm47, %v119, %v36
    %v140 = vsel %vm47, %v121, %v37
    %v141 = vsel %vm47, %v123, %v38
    %v142 = vsel %vm47, %v125, %v39
    %v143 = vsel %vm47, %v127, %v40
    %v144 = vsel %vm46, 1, 0
    %vm145 = vcmp.eq.s32.totalorder %v144, 1
    %162 = vrot.lane.b32.xlu0 %v128, 113
    %v163 = vpop.permute.xlu0 %162
    %164 = vrot.lane.b32.xlu0 %v129, 113
    %v165 = vpop.permute.xlu0 %164
    %166 = vrot.lane.b32.xlu0 %v130, 113
    %v167 = vpop.permute.xlu0 %166
    %168 = vrot.lane.b32.xlu0 %v131, 113
    %v169 = vpop.permute.xlu0 %168
    %170 = vrot.lane.b32.xlu0 %v132, 113
    %v171 = vpop.permute.xlu0 %170
    %172 = vrot.lane.b32.xlu0 %v133, 113
    %v173 = vpop.permute.xlu0 %172
    %174 = vrot.lane.b32.xlu0 %v134, 113
    %v175 = vpop.permute.xlu0 %174
    %176 = vrot.lane.b32.xlu0 %v135, 113
    %v177 = vpop.permute.xlu0 %176
    %178 = vrot.lane.b32.xlu0 %v136, 113
    %v179 = vpop.permute.xlu0 %178
    %180 = vrot.lane.b32.xlu0 %v137, 113
    %v181 = vpop.permute.xlu0 %180
    %182 = vrot.lane.b32.xlu0 %v138, 113
    %v183 = vpop.permute.xlu0 %182
    %184 = vrot.lane.b32.xlu0 %v139, 113
    %v185 = vpop.permute.xlu0 %184
    %186 = vrot.lane.b32.xlu0 %v140, 113
    %v187 = vpop.permute.xlu0 %186
    %188 = vrot.lane.b32.xlu0 %v141, 113
    %v189 = vpop.permute.xlu0 %188
    %190 = vrot.lane.b32.xlu0 %v142, 113
    %v191 = vpop.permute.xlu0 %190
    %192 = vrot.lane.b32.xlu0 %v143, 113
    %v193 = vpop.permute.xlu0 %192
    %v210 = vsel %vm145, %v163, 0.0
    %v211 = vsel %vm145, %v165, 0.0
    %v212 = vsel %vm145, %v167, 0.0
    %v213 = vsel %vm145, %v169, 0.0
    %v214 = vsel %vm145, %v171, 0.0
    %v215 = vsel %vm145, %v173, 0.0
    %v216 = vsel %vm145, %v175, 0.0
    %v217 = vsel %vm145, %v177, 0.0
    %v218 = vsel %vm145, %v179, 0.0
    %v219 = vsel %vm145, %v181, 0.0
    %v220 = vsel %vm145, %v183, 0.0
    %v221 = vsel %vm145, %v185, 0.0
    %v222 = vsel %vm145, %v187, 0.0
    %v223 = vsel %vm145, %v189, 0.0
    %v224 = vsel %vm145, %v191, 0.0
    %v225 = vsel %vm145, %v193, 0.0
    %vm226 = vcmp.lt.s32.totalorder %v42, 15
    %v227 = vsel %vm226, 1, 0
    %vm228 = vcmp.eq.s32.totalorder %v227, 1
    %229 = vrot.lane.b32.xlu0 %v128, 127
    %v230 = vpop.permute.xlu0 %229
    %231 = vrot.lane.b32.xlu0 %v129, 127
    %v232 = vpop.permute.xlu0 %231
    %233 = vrot.lane.b32.xlu0 %v130, 127
    %v234 = vpop.permute.xlu0 %233
    %235 = vrot.lane.b32.xlu0 %v131, 127
    %v236 = vpop.permute.xlu0 %235
    %237 = vrot.lane.b32.xlu0 %v132, 127
    %v238 = vpop.permute.xlu0 %237
    %239 = vrot.lane.b32.xlu0 %v133, 127
    %v240 = vpop.permute.xlu0 %239
    %241 = vrot.lane.b32.xlu0 %v134, 127
    %v242 = vpop.permute.xlu0 %241
    %243 = vrot.lane.b32.xlu0 %v135, 127
    %v244 = vpop.permute.xlu0 %243
    %245 = vrot.lane.b32.xlu0 %v136, 127
    %v246 = vpop.permute.xlu0 %245
    %247 = vrot.lane.b32.xlu0 %v137, 127
    %v248 = vpop.permute.xlu0 %247
    %249 = vrot.lane.b32.xlu0 %v138, 127
    %v250 = vpop.permute.xlu0 %249
    %251 = vrot.lane.b32.xlu0 %v139, 127
    %v252 = vpop.permute.xlu0 %251
    %253 = vrot.lane.b32.xlu0 %v140, 127
    %v254 = vpop.permute.xlu0 %253
    %255 = vrot.lane.b32.xlu0 %v141, 127
    %v256 = vpop.permute.xlu0 %255
    %257 = vrot.lane.b32.xlu0 %v142, 127
    %v258 = vpop.permute.xlu0 %257
    %259 = vrot.lane.b32.xlu0 %v143, 127
    %v260 = vpop.permute.xlu0 %259
    %v277 = vsel %vm228, %v230, 0.0
    %v278 = vsel %vm228, %v232, 0.0
    %v279 = vsel %vm228, %v234, 0.0
    %v280 = vsel %vm228, %v236, 0.0
    %v281 = vsel %vm228, %v238, 0.0
    %v282 = vsel %vm228, %v240, 0.0
    %v283 = vsel %vm228, %v242, 0.0
    %v284 = vsel %vm228, %v244, 0.0
    %v285 = vsel %vm228, %v246, 0.0
    %v286 = vsel %vm228, %v248, 0.0
    %v287 = vsel %vm228, %v250, 0.0
    %v288 = vsel %vm228, %v252, 0.0
    %v289 = vsel %vm228, %v254, 0.0
    %v290 = vsel %vm228, %v256, 0.0
    %v291 = vsel %vm228, %v258, 0.0
    %v292 = vsel %vm228, %v260, 0.0
    %v293 = vmax.f32 %v210, %v277
    %v294 = vmax.f32 %v211, %v278
    %v295 = vmax.f32 %v212, %v279
    %v296 = vmax.f32 %v213, %v280
    %v297 = vmax.f32 %v214, %v281
    %v298 = vmax.f32 %v215, %v282
    %v299 = vmax.f32 %v216, %v283
    %v300 = vmax.f32 %v217, %v284
    %v301 = vmax.f32 %v218, %v285
    %v302 = vmax.f32 %v219, %v286
    %v303 = vmax.f32 %v220, %v287
    %v304 = vmax.f32 %v221, %v288
    %v305 = vmax.f32 %v222, %v289
    %v306 = vmax.f32 %v223, %v290
    %v307 = vmax.f32 %v224, %v291
    %v308 = vmax.f32 %v225, %v292
    %v309 = vmax.f32 %v25, %v293
    %v310 = vmax.f32 %v26, %v294
    %v311 = vmax.f32 %v27, %v295
    %v312 = vmax.f32 %v28, %v296
    %v313 = vmax.f32 %v29, %v297
    %v314 = vmax.f32 %v30, %v298
    %v315 = vmax.f32 %v31, %v299
    %v316 = vmax.f32 %v32, %v300
    %v317 = vmax.f32 %v33, %v301
    %v318 = vmax.f32 %v34, %v302
    %v319 = vmax.f32 %v35, %v303
    %v320 = vmax.f32 %v36, %v304
    %v321 = vmax.f32 %v37, %v305
    %v322 = vmax.f32 %v38, %v306
    %v323 = vmax.f32 %v39, %v307
    %v324 = vmax.f32 %v40, %v308
    %vm325 = vcmp.ge.s32.totalorder %v44, 1
    %vm326 = vcmp.ge.s32.totalorder %v45, 1
    %v327 = vrot.slane %v309, 7
    %v328 = vrot.slane %v311, 7
    %v329 = vrot.slane %v313, 7
    %v330 = vrot.slane %v315, 7
    %v331 = vrot.slane %v317, 7
    %v332 = vrot.slane %v319, 7
    %v333 = vrot.slane %v321, 7
    %v334 = vrot.slane %v323, 7
    %v335 = vrot.slane %v310, 7
    %v336 = vrot.slane %v312, 7
    %v337 = vrot.slane %v314, 7
    %v338 = vrot.slane %v316, 7
    %v339 = vrot.slane %v318, 7
    %v340 = vrot.slane %v320, 7
    %v341 = vrot.slane %v322, 7
    %v342 = vrot.slane %v324, 7
    %vm343 = vcmp.lt.s32.totalorder %v44, 1
    %v344 = vsel %vm343, %v327, %v335
    %v345 = vsel %vm343, %v328, %v336
    %v346 = vsel %vm343, %v329, %v337
    %v347 = vsel %vm343, %v330, %v338
    %v348 = vsel %vm343, %v331, %v339
    %v349 = vsel %vm343, %v332, %v340
    %v350 = vsel %vm343, %v333, %v341
    %v351 = vsel %vm343, %v334, %v342
    %v352 = vsel %vm343, %v335, %v327
    %v353 = vsel %vm343, %v336, %v328
    %v354 = vsel %vm343, %v337, %v329
    %v355 = vsel %vm343, %v338, %v330
    %v356 = vsel %vm343, %v339, %v331
    %v357 = vsel %vm343, %v340, %v332
    %v358 = vsel %vm343, %v341, %v333
    %v359 = vsel %vm343, %v342, %v334
    %v360 = vsel %vm325, 1, 0
    %v361 = vsel %vm326, 1, 0
    %vm362 = vcmp.eq.s32.totalorder %v360, 1
    %vm363 = vcmp.eq.s32.totalorder %v361, 1
    %v364 = vsel %vm362, %v352, 0.0
    %v365 = vsel %vm363, %v344, 0.0
    %v366 = vsel %vm362, %v353, 0.0
    %v367 = vsel %vm363, %v345, 0.0
    %v368 = vsel %vm362, %v354, 0.0
    %v369 = vsel %vm363, %v346, 0.0
    %v370 = vsel %vm362, %v355, 0.0
    %v371 = vsel %vm363, %v347, 0.0
    %v372 = vsel %vm362, %v356, 0.0
    %v373 = vsel %vm363, %v348, 0.0
    %v374 = vsel %vm362, %v357, 0.0
    %v375 = vsel %vm363, %v349, 0.0
    %v376 = vsel %vm362, %v358, 0.0
    %v377 = vsel %vm363, %v350, 0.0
    %v378 = vsel %vm362, %v359, 0.0
    %v379 = vsel %vm363, %v351, 0.0
    %vm380 = vcmp.lt.s32.totalorder %v44, 15
    %vm381 = vcmp.lt.s32.totalorder %v45, 15
    %v382 = vrot.slane %v309, 1
    %v383 = vrot.slane %v311, 1
    %v384 = vrot.slane %v313, 1
    %v385 = vrot.slane %v315, 1
    %v386 = vrot.slane %v317, 1
    %v387 = vrot.slane %v319, 1
    %v388 = vrot.slane %v321, 1
    %v389 = vrot.slane %v323, 1
    %v390 = vrot.slane %v310, 1
    %v391 = vrot.slane %v312, 1
    %v392 = vrot.slane %v314, 1
    %v393 = vrot.slane %v316, 1
    %v394 = vrot.slane %v318, 1
    %v395 = vrot.slane %v320, 1
    %v396 = vrot.slane %v322, 1
    %v397 = vrot.slane %v324, 1
    %vm398 = vcmp.lt.s32.totalorder %v44, 7
    %v399 = vsel %vm398, %v382, %v390
    %v400 = vsel %vm398, %v383, %v391
    %v401 = vsel %vm398, %v384, %v392
    %v402 = vsel %vm398, %v385, %v393
    %v403 = vsel %vm398, %v386, %v394
    %v404 = vsel %vm398, %v387, %v395
    %v405 = vsel %vm398, %v388, %v396
    %v406 = vsel %vm398, %v389, %v397
    %v407 = vsel %vm398, %v390, %v382
    %v408 = vsel %vm398, %v391, %v383
    %v409 = vsel %vm398, %v392, %v384
    %v410 = vsel %vm398, %v393, %v385
    %v411 = vsel %vm398, %v394, %v386
    %v412 = vsel %vm398, %v395, %v387
    %v413 = vsel %vm398, %v396, %v388
    %v414 = vsel %vm398, %v397, %v389
    %v415 = vsel %vm380, 1, 0
    %v416 = vsel %vm381, 1, 0
    %vm417 = vcmp.eq.s32.totalorder %v415, 1
    %vm418 = vcmp.eq.s32.totalorder %v416, 1
    %v419 = vsel %vm417, %v399, 0.0
    %v420 = vsel %vm418, %v407, 0.0
    %v421 = vsel %vm417, %v400, 0.0
    %v422 = vsel %vm418, %v408, 0.0
    %v423 = vsel %vm417, %v401, 0.0
    %v424 = vsel %vm418, %v409, 0.0
    %v425 = vsel %vm417, %v402, 0.0
    %v426 = vsel %vm418, %v410, 0.0
    %v427 = vsel %vm417, %v403, 0.0
    %v428 = vsel %vm418, %v411, 0.0
    %v429 = vsel %vm417, %v404, 0.0
    %v430 = vsel %vm418, %v412, 0.0
    %v431 = vsel %vm417, %v405, 0.0
    %v432 = vsel %vm418, %v413, 0.0
    %v433 = vsel %vm417, %v406, 0.0
    %v434 = vsel %vm418, %v414, 0.0
    %v435 = vmax.f32 %v364, %v419
    %v436 = vmax.f32 %v365, %v420
    %v437 = vmax.f32 %v366, %v421
    %v438 = vmax.f32 %v367, %v422
    %v439 = vmax.f32 %v368, %v423
    %v440 = vmax.f32 %v369, %v424
    %v441 = vmax.f32 %v370, %v425
    %v442 = vmax.f32 %v371, %v426
    %v443 = vmax.f32 %v372, %v427
    %v444 = vmax.f32 %v373, %v428
    %v445 = vmax.f32 %v374, %v429
    %v446 = vmax.f32 %v375, %v430
    %v447 = vmax.f32 %v376, %v431
    %v448 = vmax.f32 %v377, %v432
    %v449 = vmax.f32 %v378, %v433
    %v450 = vmax.f32 %v379, %v434
    %v451 = vmax.f32 %v309, %v435
    %v452 = vmax.f32 %v310, %v436
    %v453 = vmax.f32 %v311, %v437
    %v454 = vmax.f32 %v312, %v438
    %v455 = vmax.f32 %v313, %v439
    %v456 = vmax.f32 %v314, %v440
    %v457 = vmax.f32 %v315, %v441
    %v458 = vmax.f32 %v316, %v442
    %v459 = vmax.f32 %v317, %v443
    %v460 = vmax.f32 %v318, %v444
    %v461 = vmax.f32 %v319, %v445
    %v462 = vmax.f32 %v320, %v446
    %v463 = vmax.f32 %v321, %v447
    %v464 = vmax.f32 %v322, %v448
    %v465 = vmax.f32 %v323, %v449
    %v466 = vmax.f32 %v324, %v450
    %vm467 = vcmp.eq.f32.partialorder %v25, %v451
    %vm468 = vcmp.eq.f32.partialorder %v26, %v452
    %vm469 = vcmp.eq.f32.partialorder %v27, %v453
    %vm470 = vcmp.eq.f32.partialorder %v28, %v454
    %vm471 = vcmp.eq.f32.partialorder %v29, %v455
    %vm472 = vcmp.eq.f32.partialorder %v30, %v456
    %vm473 = vcmp.eq.f32.partialorder %v31, %v457
    %vm474 = vcmp.eq.f32.partialorder %v32, %v458
    %vm475 = vcmp.eq.f32.partialorder %v33, %v459
    %vm476 = vcmp.eq.f32.partialorder %v34, %v460
    %vm477 = vcmp.eq.f32.partialorder %v35, %v461
    %vm478 = vcmp.eq.f32.partialorder %v36, %v462
    %vm479 = vcmp.eq.f32.partialorder %v37, %v463
    %vm480 = vcmp.eq.f32.partialorder %v38, %v464
    %vm481 = vcmp.eq.f32.partialorder %v39, %v465
    %vm482 = vcmp.eq.f32.partialorder %v40, %v466
    %v483 = vsel %vm467, 1, 0
    %v484 = vsel %vm468, 1, 0
    %v485 = vsel %vm469, 1, 0
    %v486 = vsel %vm470, 1, 0
    %v487 = vsel %vm471, 1, 0
    %v488 = vsel %vm472, 1, 0
    %v489 = vsel %vm473, 1, 0
    %v490 = vsel %vm474, 1, 0
    %v491 = vsel %vm475, 1, 0
    %v492 = vsel %vm476, 1, 0
    %v493 = vsel %vm477, 1, 0
    %v494 = vsel %vm478, 1, 0
    %v495 = vsel %vm479, 1, 0
    %v496 = vsel %vm480, 1, 0
    %v497 = vsel %vm481, 1, 0
    %v498 = vsel %vm482, 1, 0
    %v499 = vcvt.s32.f32 %v483
    %v500 = vcvt.s32.f32 %v484
    %v501 = vcvt.s32.f32 %v485
    %v502 = vcvt.s32.f32 %v486
    %v503 = vcvt.s32.f32 %v487
    %v504 = vcvt.s32.f32 %v488
    %v505 = vcvt.s32.f32 %v489
    %v506 = vcvt.s32.f32 %v490
    %v507 = vcvt.s32.f32 %v491
    %v508 = vcvt.s32.f32 %v492
    %v509 = vcvt.s32.f32 %v493
    %v510 = vcvt.s32.f32 %v494
    %v511 = vcvt.s32.f32 %v495
    %v512 = vcvt.s32.f32 %v496
    %v513 = vcvt.s32.f32 %v497
    %v514 = vcvt.s32.f32 %v498
    %v515 = vmul.f32 %v25, %v499
    %v516 = vmul.f32 %v26, %v500
    %v517 = vmul.f32 %v27, %v501
    %v518 = vmul.f32 %v28, %v502
    %v519 = vmul.f32 %v29, %v503
    %v520 = vmul.f32 %v30, %v504
    %v521 = vmul.f32 %v31, %v505
    %v522 = vmul.f32 %v32, %v506
    %v523 = vmul.f32 %v33, %v507
    %v524 = vmul.f32 %v34, %v508
    %v525 = vmul.f32 %v35, %v509
    %v526 = vmul.f32 %v36, %v510
    %v527 = vmul.f32 %v37, %v511
    %v528 = vmul.f32 %v38, %v512
    %v529 = vmul.f32 %v39, %v513
    %v530 = vmul.f32 %v40, %v514
    %vm531 = vcmask 130048
    %532 = vst.msk [vmem:[#allocation5] sm:$0xff] %vm531, %v515
    %533 = vst.msk [vmem:[#allocation5 + $0x8] sm:$0xff] %vm531, %v516
    %534 = vst.msk [vmem:[#allocation5 + $0x10] sm:$0xff] %vm531, %v517
    %535 = vst.msk [vmem:[#allocation5 + $0x18] sm:$0xff] %vm531, %v518
    %536 = vst.msk [vmem:[#allocation5 + $0x20] sm:$0xff] %vm531, %v519
    %537 = vst.msk [vmem:[#allocation5 + $0x28] sm:$0xff] %vm531, %v520
    %538 = vst.msk [vmem:[#allocation5 + $0x30] sm:$0xff] %vm531, %v521
    %539 = vst.msk [vmem:[#allocation5 + $0x38] sm:$0xff] %vm531, %v522
    %540 = vst.msk [vmem:[#allocation5 + $0x40] sm:$0xff] %vm531, %v523
    %541 = vst.msk [vmem:[#allocation5 + $0x48] sm:$0xff] %vm531, %v524
    %542 = vst.msk [vmem:[#allocation5 + $0x50] sm:$0xff] %vm531, %v525
    %543 = vst.msk [vmem:[#allocation5 + $0x58] sm:$0xff] %vm531, %v526
    %544 = vst.msk [vmem:[#allocation5 + $0x60] sm:$0xff] %vm531, %v527
    %545 = vst.msk [vmem:[#allocation5 + $0x68] sm:$0xff] %vm531, %v528
    %546 = vst.msk [vmem:[#allocation5 + $0x70] sm:$0xff] %vm531, %v529
    %547 = vst.msk [vmem:[#allocation5 + $0x78] sm:$0xff] %vm531, %v530
    // Predicated region
    $region10: #{tpu_custom_call.1} parent=1 // pred_check
      _
    $region11: #{tpu_custom_call.1} parent=1 // pred_check_branch
      %549 = sbr.rel (0) target = $region13
    $region12: #{tpu_custom_call.1} parent=1 // pred_region
      %551 = vsyncadd [#allocation4], 0
      %s552 = sshll.u32 [#allocation5], 4
      %s553 = int_to_ptr.vmem [resolvable:$true] %s552
      %s554 = sshll.u32 %s1, 4
      %s555 = int_to_ptr.hbm [resolvable:$true] %s554
      %560 = dma.vmem_to_hbm [thread:$0]  %s553, 2048, %s555, [#allocation4], 128, 128, 8
    $region13: #{tpu_custom_call.1} parent=1 // pred_fallthru
      _
    // Predicated region
    $region14: #{tpu_custom_call.1} parent=1 // pred_check
      _
    $region15: #{tpu_custom_call.1} parent=1 // pred_check_branch
      %562 = sbr.rel (0) target = $region17
    $region16: #{tpu_custom_call.1} parent=1 // pred_region
      %564 = dma.done [#allocation4], 2048
    $region17: #{tpu_custom_call.1} parent=1 // pred_fallthru
      _
    %565 = vsyncpa [#allocation3], 1
    %566 = vsyncpa [#allocation4], 1

</llo_original>
